<compile_context>
chip_gen: v7x
topology: tpu7x:2x2x1
jax: 0.10.0
libtpu: 0.0.40
codegen_flags: <defaults>
</compile_context>

<pallas_src>
import functools

import jax
import jax.numpy as jnp
from jax import lax
from jax.experimental import pallas as pl
from jax.experimental.pallas import tpu as pltpu


def _round_up(v, m):
    return (v + m - 1) // m * m


def _round_down(v, m):
    return (v // m) * m


# --------------- single fused pass (full H*W per block) ---------------------

def _frn_fused_body(x_ref, wb_ref, o_ref, inv_hw, eps):
    # x_ref : (TR, HW) block in the input's native dtype, one row per (n, c).
    # wb_ref: (TR, 2) f32 — column 0 = weight, column 1 = bias (per row).
    x = x_ref[...].astype(jnp.float32)
    # mean(x^2) over the true spatial extent; the block's last dim is the full
    # logical H*W, so Mosaic masks any physical lane padding in the reduction.
    nu2 = jnp.sum(x * x, axis=-1, keepdims=True) * inv_hw        # (TR, 1) XLU
    inv = lax.rsqrt(nu2 + eps)                                   # (TR, 1) EUP
    wb = wb_ref[...]
    s = wb[:, 0:1] * inv                                         # fold scale into per-row scalar
    b = wb[:, 1:2]
    o_ref[...] = (x * s + b).astype(o_ref.dtype)                 # one mul + one add per element


def _frn_fused_kernel(x_ref, wb_ref, o_ref, *, inv_hw, eps):
    # eps folded in as a compile-time constant (the common, non-learnable case).
    _frn_fused_body(x_ref, wb_ref, o_ref, inv_hw, eps)


def _frn_fused_kernel_eps(eps_ref, x_ref, wb_ref, o_ref, *, inv_hw):
    # Variant for a traced (learnable) eps living in SMEM.
    _frn_fused_body(x_ref, wb_ref, o_ref, inv_hw, eps_ref[0])


# --------------- two-pass fallback for very large H*W -----------------------

def _frn_ssq_kernel(x_ref, ssq_ref, *, thw, true_hw, mask_tail):
    # Per-row sum of squares, accumulated across spatial tiles (grid axis 1 is
    # "arbitrary"; the (TR, 1) output block stays VMEM-resident across it).
    j = pl.program_id(1)
    x = x_ref[...].astype(jnp.float32)
    if mask_tail:
        # Last spatial tile is partial: exclude garbage lanes from the sum.
        col = j * thw + lax.broadcasted_iota(jnp.int32, x.shape, 1)
        x = jnp.where(col < true_hw, x, 0.0)
    part = jnp.sum(x * x, axis=-1, keepdims=True)

    @pl.when(j == 0)
    def _():
        ssq_ref[...] = part

    @pl.when(j > 0)
    def _():
        ssq_ref[...] += part


def _frn_apply_kernel(x_ref, sb_ref, o_ref):
    # y = x * s + b with per-row s = w * rsqrt(nu2 + |eps|), b precomputed.
    x = x_ref[...].astype(jnp.float32)
    sb = sb_ref[...]
    o_ref[...] = (x * sb[:, 0:1] + sb[:, 1:2]).astype(o_ref.dtype)


# --------------------------------- wrapper -----------------------------------

def _tpu_budgets():
    """Generation-aware (target f32 block bytes, vmem_limit_bytes)."""
    try:
        cap = int(pltpu.get_tpu_info().vmem_capacity_bytes)
    except Exception:
        cap = 64 * 1024 * 1024                       # be conservative (v7x-sized)
    if cap >= 96 * 1024 * 1024:                      # v5e / v6e: 128 MiB physical VMEM
        return 8 * 1024 * 1024, 96 * 1024 * 1024
    return 4 * 1024 * 1024, 48 * 1024 * 1024         # v7x: 64 MiB physical VMEM


def filter_response_norm2d(x, weight, bias, eps=1e-6, *,
                           block_f32_bytes=None, vmem_limit_bytes=None):
    """FRN forward. x: (N, C, H, W); weight, bias: (1, C, 1, 1); eps: scalar."""
    N, C, H, W = x.shape
    NC, HW = N * C, H * W
    in_dtype = x.dtype

    default_block, default_limit = _tpu_budgets()
    target_f32_block = default_block if block_f32_bytes is None else int(block_f32_bytes)
    vmem_limit = default_limit if vmem_limit_bytes is None else int(vmem_limit_bytes)

    # ---- glue (plain JAX): free reshape + tiny O(N*C) parameter packing -----
    x2d = x.reshape(NC, HW)                                      # view, no HBM pass
    w_col = jnp.broadcast_to(weight.reshape(1, C), (N, C)).reshape(NC, 1).astype(jnp.float32)
    b_col = jnp.broadcast_to(bias.reshape(1, C), (N, C)).reshape(NC, 1).astype(jnp.float32)

    # Block sizing is by the f32 in-kernel footprint (upcast temporaries
    # dominate regardless of the input dtype).
    min_tr = NC if NC < 8 else 8
    two_pass = min_tr * HW * 4 > target_f32_block

    if not two_pass:
        # ---------------- single fused pass: full H*W per block -------------
        tr_budget = max(1, target_f32_block // (4 * HW))
        if NC <= 8:
            TR = NC                                   # block == full row extent
        else:
            TR = max(8, _round_down(min(tr_budget, NC), 8))
            if TR >= NC and NC >= 16:
                # keep >= 2 grid steps so both v7x TensorCores get work
                TR = max(8, _round_up(NC // 2, 8))
        grid = (pl.cdiv(NC, TR),)

        wb = jnp.concatenate([w_col, b_col], axis=1)             # (NC, 2) f32
        inv_hw = 1.0 / float(HW)

        eps_static = abs(float(eps)) if isinstance(eps, (int, float)) else None

        x_spec = pl.BlockSpec((TR, HW), lambda i: (i, 0))        # full-extent H*W: no pad needed
        wb_spec = pl.BlockSpec((TR, 2), lambda i: (i, 0))
        o_spec = pl.BlockSpec((TR, HW), lambda i: (i, 0))
        out_shape = jax.ShapeDtypeStruct((NC, HW), in_dtype)
        cparams = pltpu.CompilerParams(
            dimension_semantics=("parallel",),                   # megacore on v7x
            vmem_limit_bytes=vmem_limit,
        )

        if eps_static is not None:
            out2d = pl.pallas_call(
                functools.partial(_frn_fused_kernel, inv_hw=inv_hw, eps=eps_static),
                out_shape=out_shape,
                grid=grid,
                in_specs=[x_spec, wb_spec],
                out_specs=o_spec,
                compiler_params=cparams,
            )(x2d, wb)
        else:
            eps_arr = jnp.abs(jnp.asarray(eps, jnp.float32)).reshape(1)
            out2d = pl.pallas_call(
                functools.partial(_frn_fused_kernel_eps, inv_hw=inv_hw),
                out_shape=out_shape,
                grid=grid,
                in_specs=[pl.BlockSpec(memory_space=pltpu.MemorySpace.SMEM),
                          x_spec, wb_spec],
                out_specs=o_spec,
                compiler_params=cparams,
            )(eps_arr, x2d, wb)
        return out2d.reshape(N, C, H, W)

    # ------------- two-pass fallback: tile H*W as a reduction axis ----------
    TR = min_tr
    thw_budget = max(128, target_f32_block // (4 * TR))
    THW = max(128, min(_round_down(thw_budget, 128), _round_up(HW, 128)))
    grid2 = (pl.cdiv(NC, TR), pl.cdiv(HW, THW))
    mask_tail = (HW % THW) != 0

    ssq = pl.pallas_call(
        functools.partial(_frn_ssq_kernel, thw=THW, true_hw=HW, mask_tail=mask_tail),
        out_shape=jax.ShapeDtypeStruct((NC, 1), jnp.float32),
        grid=grid2,
        in_specs=[pl.BlockSpec((TR, THW), lambda i, j: (i, j))],
        out_specs=pl.BlockSpec((TR, 1), lambda i, j: (i, 0)),
        compiler_params=pltpu.CompilerParams(
            dimension_semantics=("parallel", "arbitrary"),
            vmem_limit_bytes=vmem_limit,
        ),
    )(x2d)

    # Per-row scale/bias on a tiny (NC, 2) array; works for static or traced eps.
    eps_abs = jnp.abs(jnp.asarray(eps, jnp.float32))
    nu2 = ssq * (1.0 / float(HW))
    s_col = w_col * lax.rsqrt(nu2 + eps_abs)
    sb = jnp.concatenate([s_col, b_col], axis=1)                 # (NC, 2) f32

    out2d = pl.pallas_call(
        _frn_apply_kernel,
        out_shape=jax.ShapeDtypeStruct((NC, HW), in_dtype),
        grid=grid2,
        in_specs=[pl.BlockSpec((TR, THW), lambda i, j: (i, j)),
                  pl.BlockSpec((TR, 2), lambda i, j: (i, 0))],
        out_specs=pl.BlockSpec((TR, THW), lambda i, j: (i, j)),
        compiler_params=pltpu.CompilerParams(
            dimension_semantics=("parallel", "parallel"),
            vmem_limit_bytes=vmem_limit,
        ),
    )(x2d, sb)
    return out2d.reshape(N, C, H, W)


def _reference(x, weight, bias, eps=1e-6):
    xf = x.astype(jnp.float32)
    nu2 = jnp.mean(xf * xf, axis=(2, 3), keepdims=True)
    y = xf * lax.rsqrt(nu2 + jnp.abs(eps))
    return (weight * y + bias).astype(x.dtype)


if __name__ == "__main__":
    key = jax.random.PRNGKey(0)
    eps = 1e-6

    # Primary example: small shapes consistent with the module.
    N, C, H, W = 2, 4, 16, 16
    x = jax.random.normal(key, (N, C, H, W), dtype=jnp.float32)
    weight = jnp.ones((1, C, 1, 1), dtype=jnp.float32)           # reset_parameters(): ones
    bias = jnp.zeros((1, C, 1, 1), dtype=jnp.float32)            # reset_parameters(): zeros

    out = jax.block_until_ready(filter_response_norm2d(x, weight, bias, eps))
    ref = _reference(x, weight, bias, eps)
    assert out.shape == (N, C, H, W) and out.dtype == x.dtype
    assert jnp.allclose(out, ref, atol=1e-5, rtol=1e-5), "mismatch (fused path)"

    # Non-128-multiple spatial extent (7x7): exercises the no-pad, full-extent
    # block path that replaced the wrapper pad/slice.
    k1, k2, k3 = jax.random.split(key, 3)
    x7 = jax.random.normal(k1, (2, 4, 7, 7), dtype=jnp.float32)
    w7 = 1.0 + 0.5 * jax.random.normal(k2, (1, 4, 1, 1), dtype=jnp.float32)
    b7 = 0.1 * jax.random.normal(k3, (1, 4, 1, 1), dtype=jnp.float32)
    out7 = jax.block_until_ready(filter_response_norm2d(x7, w7, b7, eps))
    assert jnp.allclose(out7, _reference(x7, w7, b7, eps), atol=1e-5, rtol=1e-5), \
        "mismatch (non-128-multiple HW)"

    # Force the large-H*W two-pass path with a tiny block budget to validate
    # spatial-tile accumulation + tail masking on a small shape.
    x20 = jax.random.normal(k1, (2, 4, 20, 20), dtype=jnp.float32)
    out20 = jax.block_until_ready(
        filter_response_norm2d(x20, w7, b7, eps, block_f32_bytes=8 * 1024))
    assert jnp.allclose(out20, _reference(x20, w7, b7, eps), atol=1e-5, rtol=1e-5), \
        "mismatch (two-pass path)"

    print("KERNEL_OK")
</pallas_src>

<mosaic_0001>
module attributes {stable_mosaic.version = 11 : i64} {
  func.func @_frn_fused_kernel(%arg0: i32, %arg1: memref<8x256xf32, #tpu.memory_space<vmem>>, %arg2: memref<8x2xf32, #tpu.memory_space<vmem>>, %arg3: memref<8x256xf32, #tpu.memory_space<vmem>>) attributes {dimension_semantics = [#tpu.dimension_semantics<parallel>], iteration_bounds = array<i64: 1>, scalar_prefetch = 0 : i64, scratch_operands = 0 : i64, tpu.core_type = #tpu.core_type<tc>, window_params = [{transform_indices = @transform_0, window_bounds = array<i64: 8, 256>}, {transform_indices = @transform_1, window_bounds = array<i64: 8, 2>}, {transform_indices = @transform_2, window_bounds = array<i64: 8, 256>}]} {
    %c0 = arith.constant 0 : index
    %c0_0 = arith.constant 0 : index
    %0 = vector.load %arg1[%c0, %c0_0] : memref<8x256xf32, #tpu.memory_space<vmem>>, vector<8x256xf32>
    %1 = arith.mulf %0, %0 : vector<8x256xf32>
    %cst = arith.constant dense<0.000000e+00> : vector<8xf32>
    %2 = vector.multi_reduction <add>, %1, %cst [1] : vector<8x256xf32> to vector<8xf32>
    %3 = vector.shape_cast %2 : vector<8xf32> to vector<8x1xf32>
    %cst_1 = arith.constant 3.906250e-03 : f32
    %4 = vector.broadcast %cst_1 : f32 to vector<8x1xf32>
    %5 = arith.mulf %3, %4 : vector<8x1xf32>
    %cst_2 = arith.constant 9.99999997E-7 : f32
    %6 = vector.broadcast %cst_2 : f32 to vector<8x1xf32>
    %7 = arith.addf %5, %6 : vector<8x1xf32>
    %8 = math.rsqrt %7 : vector<8x1xf32>
    %c0_3 = arith.constant 0 : index
    %c0_4 = arith.constant 0 : index
    %9 = vector.load %arg2[%c0_3, %c0_4] : memref<8x2xf32, #tpu.memory_space<vmem>>, vector<8x2xf32>
    %10 = vector.extract_strided_slice %9 {offsets = [0, 0], sizes = [8, 1], strides = [1, 1]} : vector<8x2xf32> to vector<8x1xf32>
    %11 = arith.mulf %10, %8 : vector<8x1xf32>
    %12 = vector.extract_strided_slice %9 {offsets = [0, 1], sizes = [8, 1], strides = [1, 1]} : vector<8x2xf32> to vector<8x1xf32>
    %13 = vector.broadcast %11 : vector<8x1xf32> to vector<8x256xf32>
    %14 = arith.mulf %0, %13 : vector<8x256xf32>
    %15 = vector.broadcast %12 : vector<8x1xf32> to vector<8x256xf32>
    %16 = arith.addf %14, %15 : vector<8x256xf32>
    %c0_5 = arith.constant 0 : index
    %c0_6 = arith.constant 0 : index
    %17 = vector.load %arg3[%c0_5, %c0_6] : memref<8x256xf32, #tpu.memory_space<vmem>>, vector<8x256xf32>
    tpu.vector_store %arg3[%c0_5, %c0_6], %16 {strides = array<i32>} : memref<8x256xf32, #tpu.memory_space<vmem>>, vector<8x256xf32>,
    return
  }
  func.func @transform_0(%arg0: i32) -> (i32, i32) {
    %c0_i32 = arith.constant 0 : i32
    %c0_i32_0 = arith.constant 0 : i32
    return %arg0, %c0_i32 : i32, i32
  }
  func.func @transform_1(%arg0: i32) -> (i32, i32) {
    %c0_i32 = arith.constant 0 : i32
    %c0_i32_0 = arith.constant 0 : i32
    return %arg0, %c0_i32 : i32, i32
  }
  func.func @transform_2(%arg0: i32) -> (i32, i32) {
    %c0_i32 = arith.constant 0 : i32
    %c0_i32_0 = arith.constant 0 : i32
    return %arg0, %c0_i32 : i32, i32
  }
}

</mosaic_0001>

<llo_original>
// kernel: tpu_custom_call.1
$region0: #{tpu_custom_call.1}
  #allocation0 [shape = 'u32[]', space=smem, size = 0x4, offset = 0x4, fixed_abs, tag = 'smem constant byte address 0x4 - core index']
  #allocation1 [shape = 'u32[144,128]{1,0:T(1,128)}', space=vmem, size = 0x12000, scoped, tag = 'internal scratch']
  %s0 = inlined_call_operand.hbm [shape: f32[8,256], index: 0, kind: input, shape index: {}]
  %s1 = inlined_call_operand.vmem [shape: f32[8,2], index: 1, kind: input, shape index: {}]
  %s2 = inlined_call_operand.hbm [shape: f32[8,256], index: 2, kind: output, shape index: {}]
  %s3 = sld [smem:[#allocation0]]
  $region22: #{tpu_custom_call.1} parent=0
    _
  %s5 = ssub.s32 1, %s3
  %s6 = scalar_select 0, %s5, %s3
  $region1: #{tpu_custom_call.1} parent=0
    #allocation2 [shape = 'u8[8192]{0}', space=vmem, size = 0x2000, scoped, tag = 'input window, operand 0, single buffered']
    #allocation3 [shape = 's32[1]{0}', space=sflag, size = 0x4, scoped, tag = 'scoped memory for tpu_custom_call.1']
    #allocation4 [shape = 's32[1]{0}', space=sflag, size = 0x4, scoped, tag = 'scoped memory for tpu_custom_call.1']
    #allocation5 [shape = 'u8[8192]{0}', space=vmem, size = 0x2000, scoped, tag = 'output window, operand 0, single buffered']
    %7 = vsyncpa [#allocation3], 0
    %8 = vsyncpa [#allocation4], 0
    // Predicated region
    $region2: #{tpu_custom_call.1} parent=1 // pred_check
      _
    $region3: #{tpu_custom_call.1} parent=1 // pred_check_branch
      %10 = sbr.rel (0) target = $region5
    $region4: #{tpu_custom_call.1} parent=1 // pred_region
      %s12 = ssub.s32 256, 256
      %13 = vsyncadd [#allocation3], %s12
      %s15 = sshll.u32 [#allocation2], 4
      %s16 = int_to_ptr.vmem [resolvable:$true] %s15
      %18 = dma.hbm_to_vmem [thread:$0]  %s0, 256, %s16, [#allocation3]
    $region5: #{tpu_custom_call.1} parent=1 // pred_fallthru
      _
    // Predicated region
    $region6: #{tpu_custom_call.1} parent=1 // pred_check
      _
    $region7: #{tpu_custom_call.1} parent=1 // pred_check_branch
      %20 = sbr.rel (0) target = $region9
    $region8: #{tpu_custom_call.1} parent=1 // pred_region
      _
    $region9: #{tpu_custom_call.1} parent=1 // pred_fallthru
      _
    // Predicated region
    $region10: #{tpu_custom_call.1} parent=1 // pred_check
      _
    $region11: #{tpu_custom_call.1} parent=1 // pred_check_branch
      %22 = sbr.rel (0) target = $region13
    $region12: #{tpu_custom_call.1} parent=1 // pred_region
      %23 = dma.done [#allocation3], 256
    $region13: #{tpu_custom_call.1} parent=1 // pred_fallthru
      _
    %v24 = vld [vmem:[#allocation2] sm:$0xff]
    %v25 = vld [vmem:[#allocation2 + $0x8] sm:$0xff]
    %v26 = vmul.f32 %v24, %v24
    %v27 = vmul.f32 %v25, %v25
    %v28 = vadd.f32 %v26, %v27
    %29 = vadd.xlane.f32.xlu0 %v28
    %v30 = vpop.xlane.xlu0 %29
    %v31 = vmul.f32 %v30, 0.00390625
    %v32 = vadd.f32 %v31, 1e-06
    %v33 = vrsqrt.pop %v32
    %v34 = vld [vmem:[%s1] sm:$0xff]
    %v35 = vmul.f32 %v34, %v33
    %37 = vset.pattern.permute.xlu0 0
    %38 = vperm.xlu0 %37, %v35
    %v39 = vpop.permute.xlu0 %38
    %v41 = vmul.f32 %v24, %v39
    %v42 = vmul.f32 %v25, %v39
    %44 = vset.pattern.permute.xlu0 1
    %45 = vperm.xlu0 %44, %v34
    %v46 = vpop.permute.xlu0 %45
    %v48 = vadd.f32 %v41, %v46
    %v49 = vadd.f32 %v42, %v46
    %50 = vst [vmem:[#allocation5] sm:$0xff] %v48
    %51 = vst [vmem:[#allocation5 + $0x8] sm:$0xff] %v49
    // Predicated region
    $region14: #{tpu_custom_call.1} parent=1 // pred_check
      _
    $region15: #{tpu_custom_call.1} parent=1 // pred_check_branch
      %53 = sbr.rel (0) target = $region17
    $region16: #{tpu_custom_call.1} parent=1 // pred_region
      %s55 = ssub.s32 256, 256
      %56 = vsyncadd [#allocation4], %s55
      %s58 = sshll.u32 [#allocation5], 4
      %s59 = int_to_ptr.vmem [resolvable:$true] %s58
      %61 = dma.vmem_to_hbm [thread:$0]  %s59, 256, %s2, [#allocation4]
    $region17: #{tpu_custom_call.1} parent=1 // pred_fallthru
      _
    // Predicated region
    $region18: #{tpu_custom_call.1} parent=1 // pred_check
      _
    $region19: #{tpu_custom_call.1} parent=1 // pred_check_branch
      %63 = sbr.rel (0) target = $region21
    $region20: #{tpu_custom_call.1} parent=1 // pred_region
      %64 = dma.done [#allocation4], 256
    $region21: #{tpu_custom_call.1} parent=1 // pred_fallthru
      _
    %65 = vsyncpa [#allocation3], 1
    %66 = vsyncpa [#allocation4], 1

</llo_original>
